<compile_context>
chip_gen: v7x
topology: tpu7x:2x2x1
jax: 0.10.0
libtpu: 0.0.40
codegen_flags: <defaults>
</compile_context>

<pallas_src>
import functools

import jax
import jax.numpy as jnp
from jax.experimental import pallas as pl
from jax.experimental.pallas import tpu as pltpu


def _pick_hw_tile(hw, max_tile=2048):
    """Largest multiple-of-128 divisor of hw that is <= max_tile (else full hw)."""
    if hw % 128 != 0:
        return hw
    t = 128
    while t * 2 <= max_tile and hw % (t * 2) == 0:
        t *= 2
    return t


def _pool_mlp_kernel(x_ref, w1t_ref, b1_ref, w2_ref, b2_ref, mask_ref,
                     sum_acc, max_acc, *, inv_hw):
    # x_ref:   (C, T)   one HW tile of one sample (N axis squeezed)
    # w1t_ref: (C, Ck)  first Linear weight, transposed
    # b1_ref:  (1, Ck)
    # w2_ref:  (C, Ck)  second Linear weight
    # b2_ref:  (C, 1)
    # mask_ref:(C, 1)   per-sample sigmoid gate (written at last HW step)
    # sum_acc / max_acc: (C, 1) VMEM scratch accumulators
    k = pl.program_id(1)

    @pl.when(k == 0)
    def _init():
        sum_acc[...] = jnp.zeros_like(sum_acc)
        max_acc[...] = jnp.full_like(max_acc, -jnp.inf)

    xb = x_ref[...].astype(jnp.float32)                                   # (C, T)
    sum_acc[...] += jnp.sum(xb, axis=-1, keepdims=True)                   # (C, 1)
    max_acc[...] = jnp.maximum(max_acc[...], jnp.max(xb, axis=-1, keepdims=True))

    @pl.when(k == pl.num_programs(1) - 1)
    def _finalize():
        w1t = w1t_ref[...]        # (C, Ck)
        b1 = b1_ref[...]          # (1, Ck)
        w2 = w2_ref[...]          # (C, Ck)
        b2 = b2_ref[...]          # (C, 1)

        def mlp(p):               # p: (C, 1) -> (C, 1); VPU multiplies + XLU reduces
            h = jnp.maximum(jnp.sum(w1t * p, axis=0, keepdims=True) + b1, 0.0)  # (1, Ck)
            return jnp.sum(w2 * h, axis=-1, keepdims=True) + b2                  # (C, 1)

        avg = sum_acc[...] * inv_hw
        att = mlp(avg) + mlp(max_acc[...])
        mask_ref[...] = jax.nn.sigmoid(att)


def _broadcast_kernel(mask_ref, out_ref):
    # mask_ref: (C, 1), out_ref: (C, T) -> pure lane broadcast, lane-dense store.
    out_ref[...] = jnp.broadcast_to(mask_ref[...], out_ref.shape).astype(out_ref.dtype)


def cbam_channel_attention(x, w1, b1, w2, b2, *, max_hw_tile=2048):
    """Returns sigmoid(mlp(avg_pool) + mlp(max_pool)) broadcast to x.shape.

    x : (N, C, H, W)
    w1: (Ck, C), b1: (Ck,)   -- Linear(C -> Ck)
    w2: (C, Ck), b2: (C,)    -- Linear(Ck -> C)
    """
    N, C, H, W = x.shape
    HW = H * W
    Ck = w1.shape[0]

    x3 = x.reshape(N, C, HW)
    w1t = w1.T.astype(jnp.float32)                 # (C, Ck)
    b1r = b1.reshape(1, Ck).astype(jnp.float32)    # (1, Ck)
    w2f = w2.astype(jnp.float32)                   # (C, Ck)
    b2c = b2.reshape(C, 1).astype(jnp.float32)     # (C, 1)

    itemsize = x.dtype.itemsize
    t_pool = _pick_hw_tile(HW, max_hw_tile)
    k_steps = HW // t_pool

    pool_cost = pl.CostEstimate(
        flops=2 * N * C * HW + 8 * N * C * Ck,
        transcendentals=N * C,
        bytes_accessed=N * C * HW * itemsize + N * C * 4 + 4 * C * Ck * 4,
    )

    # ---- Pass 1: full-spatial avg & max pooling + excite MLP + sigmoid -> (N, C, 1)
    mask = pl.pallas_call(
        functools.partial(_pool_mlp_kernel, inv_hw=1.0 / HW),
        out_shape=jax.ShapeDtypeStruct((N, C, 1), jnp.float32),
        grid=(N, k_steps),
        in_specs=[
            pl.BlockSpec((None, C, t_pool), lambda n, k: (n, 0, k)),
            pl.BlockSpec((C, Ck), lambda n, k: (0, 0)),
            pl.BlockSpec((1, Ck), lambda n, k: (0, 0)),
            pl.BlockSpec((C, Ck), lambda n, k: (0, 0)),
            pl.BlockSpec((C, 1), lambda n, k: (0, 0)),
        ],
        out_specs=pl.BlockSpec((None, C, 1), lambda n, k: (n, 0, 0)),
        scratch_shapes=[pltpu.VMEM((C, 1), jnp.float32),
                        pltpu.VMEM((C, 1), jnp.float32)],
        compiler_params=pltpu.CompilerParams(
            dimension_semantics=("parallel", "arbitrary")),
        cost_estimate=pool_cost,
    )(x3, w1t, b1r, w2f, b2c)

    t_out = _pick_hw_tile(HW, max_hw_tile)
    j_steps = HW // t_out

    bcast_cost = pl.CostEstimate(
        flops=0,
        transcendentals=0,
        bytes_accessed=N * C * HW * itemsize + N * C * 4,
    )

    # ---- Pass 2: broadcast (interpolate/expand_as) the gate to (N, C, HW)
    scale = pl.pallas_call(
        _broadcast_kernel,
        out_shape=jax.ShapeDtypeStruct((N, C, HW), x.dtype),
        grid=(N, j_steps),
        in_specs=[pl.BlockSpec((None, C, 1), lambda n, j: (n, 0, 0))],
        out_specs=pl.BlockSpec((None, C, t_out), lambda n, j: (n, 0, j)),
        compiler_params=pltpu.CompilerParams(
            dimension_semantics=("parallel", "parallel")),
        cost_estimate=bcast_cost,
    )(mask)

    return scale.reshape(N, C, H, W)


def cbam_channel_attention_ref(x, w1, b1, w2, b2):
    """Pure-JAX reference mirroring the PyTorch forward (returns the scale map)."""
    N, C, H, W = x.shape
    xf = x.reshape(N, C, H * W)
    avg = jnp.mean(xf, axis=-1)
    mx = jnp.max(xf, axis=-1)

    def mlp(p):
        h = jnp.maximum(p @ w1.T + b1, 0.0)
        return h @ w2.T + b2

    att = mlp(avg) + mlp(mx)
    scale = jax.nn.sigmoid(att)
    return jnp.broadcast_to(scale[:, :, None, None], x.shape)


if __name__ == "__main__":
    N, C, H, W = 2, 32, 16, 16      # gate_channels=32, spatial 16x16
    reduction = 16
    Ck = C // reduction             # hidden width of the shared MLP (= 2)

    key = jax.random.PRNGKey(0)
    kx, k1, kb1, k2, kb2 = jax.random.split(key, 5)

    x = jax.random.normal(kx, (N, C, H, W), dtype=jnp.float32)
    # Deterministic synthetic parameters (shapes from nn.Linear in the module):
    w1 = jax.random.normal(k1, (Ck, C), dtype=jnp.float32) * 0.2
    b1 = jax.random.normal(kb1, (Ck,), dtype=jnp.float32) * 0.1
    w2 = jax.random.normal(k2, (C, Ck), dtype=jnp.float32) * 0.2
    b2 = jax.random.normal(kb2, (C,), dtype=jnp.float32) * 0.1

    # max_hw_tile=128 forces a 2-step HW reduction so the accumulator path is exercised.
    out = cbam_channel_attention(x, w1, b1, w2, b2, max_hw_tile=128)
    out = jax.block_until_ready(out)

    ref = cbam_channel_attention_ref(x, w1, b1, w2, b2)
    assert out.shape == (N, C, H, W)
    assert jnp.allclose(out, ref, rtol=1e-4, atol=1e-5), "mismatch vs JAX reference"

    print("KERNEL_OK")
</pallas_src>

<mosaic_0001>
module attributes {stable_mosaic.version = 11 : i64} {
  func.func @_pool_mlp_kernel(%arg0: i32, %arg1: i32, %arg2: memref<1x32x128xf32, #tpu.memory_space<vmem>>, %arg3: memref<32x2xf32, #tpu.memory_space<vmem>>, %arg4: memref<1x2xf32, #tpu.memory_space<vmem>>, %arg5: memref<32x2xf32, #tpu.memory_space<vmem>>, %arg6: memref<32x1xf32, #tpu.memory_space<vmem>>, %arg7: memref<1x32x1xf32, #tpu.memory_space<vmem>>, %arg8: memref<32x1xf32, #tpu.memory_space<vmem>>, %arg9: memref<32x1xf32, #tpu.memory_space<vmem>>) attributes {dimension_semantics = [#tpu.dimension_semantics<parallel>, #tpu.dimension_semantics<arbitrary>], iteration_bounds = array<i64: 2, 2>, scalar_prefetch = 0 : i64, scratch_operands = 2 : i64, tpu.core_type = #tpu.core_type<tc>, window_params = [{transform_indices = @transform_0, window_bounds = array<i64: 1, 32, 128>}, {pipeline_mode = #tpu.pipeline_mode<synchronous>, transform_indices = @transform_1, window_bounds = array<i64: 32, 2>}, {pipeline_mode = #tpu.pipeline_mode<synchronous>, transform_indices = @transform_2, window_bounds = array<i64: 1, 2>}, {pipeline_mode = #tpu.pipeline_mode<synchronous>, transform_indices = @transform_3, window_bounds = array<i64: 32, 2>}, {pipeline_mode = #tpu.pipeline_mode<synchronous>, transform_indices = @transform_4, window_bounds = array<i64: 32, 1>}, {transform_indices = @transform_5, window_bounds = array<i64: 1, 32, 1>}]} {
    %c0_i32 = arith.constant 0 : i32
    %0 = arith.cmpi eq, %arg1, %c0_i32 : i32
    %1 = arith.extui %0 : i1 to i32
    %c0_i32_0 = arith.constant 0 : i32
    %2 = arith.cmpi ne, %1, %c0_i32_0 : i32
    scf.if %2 {
      %cst_13 = arith.constant 0.000000e+00 : f32
      %18 = vector.broadcast %cst_13 : f32 to vector<32x1xf32>
      %c0_14 = arith.constant 0 : index
      %c0_15 = arith.constant 0 : index
      %19 = vector.load %arg8[%c0_14, %c0_15] : memref<32x1xf32, #tpu.memory_space<vmem>>, vector<32x1xf32>
      tpu.vector_store %arg8[%c0_14, %c0_15], %18 {strides = array<i32>} : memref<32x1xf32, #tpu.memory_space<vmem>>, vector<32x1xf32>,
      %cst_16 = arith.constant 0xFF800000 : f32
      %20 = vector.broadcast %cst_16 : f32 to vector<32x1xf32>
      %c0_17 = arith.constant 0 : index
      %c0_18 = arith.constant 0 : index
      %21 = vector.load %arg9[%c0_17, %c0_18] : memref<32x1xf32, #tpu.memory_space<vmem>>, vector<32x1xf32>
      tpu.vector_store %arg9[%c0_17, %c0_18], %20 {strides = array<i32>} : memref<32x1xf32, #tpu.memory_space<vmem>>, vector<32x1xf32>,
    } else {
    }
    %c0 = arith.constant 0 : index
    %c0_1 = arith.constant 0 : index
    %c0_2 = arith.constant 0 : index
    %3 = vector.load %arg2[%c0, %c0_1, %c0_2] : memref<1x32x128xf32, #tpu.memory_space<vmem>>, vector<1x32x128xf32>
    %4 = vector.shape_cast %3 : vector<1x32x128xf32> to vector<32x128xf32>
    %c0_3 = arith.constant 0 : index
    %c0_4 = arith.constant 0 : index
    %5 = vector.load %arg8[%c0_3, %c0_4] : memref<32x1xf32, #tpu.memory_space<vmem>>, vector<32x1xf32>
    %cst = arith.constant dense<0.000000e+00> : vector<32xf32>
    %6 = vector.multi_reduction <add>, %4, %cst [1] : vector<32x128xf32> to vector<32xf32>
    %7 = vector.shape_cast %6 : vector<32xf32> to vector<32x1xf32>
    %8 = arith.addf %5, %7 : vector<32x1xf32>
    %c0_5 = arith.constant 0 : index
    %c0_6 = arith.constant 0 : index
    %9 = vector.load %arg8[%c0_5, %c0_6] : memref<32x1xf32, #tpu.memory_space<vmem>>, vector<32x1xf32>
    tpu.vector_store %arg8[%c0_5, %c0_6], %8 {strides = array<i32>} : memref<32x1xf32, #tpu.memory_space<vmem>>, vector<32x1xf32>,
    %c0_7 = arith.constant 0 : index
    %c0_8 = arith.constant 0 : index
    %10 = vector.load %arg9[%c0_7, %c0_8] : memref<32x1xf32, #tpu.memory_space<vmem>>, vector<32x1xf32>
    %cst_9 = arith.constant dense<0xFF800000> : vector<32xf32>
    %11 = vector.multi_reduction <maximumf>, %4, %cst_9 [1] : vector<32x128xf32> to vector<32xf32>
    %12 = vector.shape_cast %11 : vector<32xf32> to vector<32x1xf32>
    %13 = arith.maximumf %10, %12 : vector<32x1xf32>
    %c0_10 = arith.constant 0 : index
    %c0_11 = arith.constant 0 : index
    %14 = vector.load %arg9[%c0_10, %c0_11] : memref<32x1xf32, #tpu.memory_space<vmem>>, vector<32x1xf32>
    tpu.vector_store %arg9[%c0_10, %c0_11], %13 {strides = array<i32>} : memref<32x1xf32, #tpu.memory_space<vmem>>, vector<32x1xf32>,
    %c1_i32 = arith.constant 1 : i32
    %15 = arith.cmpi eq, %arg1, %c1_i32 : i32
    %16 = arith.extui %15 : i1 to i32
    %c0_i32_12 = arith.constant 0 : i32
    %17 = arith.cmpi ne, %16, %c0_i32_12 : i32
    scf.if %17 {
      %c0_13 = arith.constant 0 : index
      %c0_14 = arith.constant 0 : index
      %18 = vector.load %arg3[%c0_13, %c0_14] : memref<32x2xf32, #tpu.memory_space<vmem>>, vector<32x2xf32>
      %c0_15 = arith.constant 0 : index
      %c0_16 = arith.constant 0 : index
      %19 = vector.load %arg4[%c0_15, %c0_16] : memref<1x2xf32, #tpu.memory_space<vmem>>, vector<1x2xf32>
      %c0_17 = arith.constant 0 : index
      %c0_18 = arith.constant 0 : index
      %20 = vector.load %arg5[%c0_17, %c0_18] : memref<32x2xf32, #tpu.memory_space<vmem>>, vector<32x2xf32>
      %c0_19 = arith.constant 0 : index
      %c0_20 = arith.constant 0 : index
      %21 = vector.load %arg6[%c0_19, %c0_20] : memref<32x1xf32, #tpu.memory_space<vmem>>, vector<32x1xf32>
      %c0_21 = arith.constant 0 : index
      %c0_22 = arith.constant 0 : index
      %22 = vector.load %arg8[%c0_21, %c0_22] : memref<32x1xf32, #tpu.memory_space<vmem>>, vector<32x1xf32>
      %cst_23 = arith.constant 3.906250e-03 : f32
      %23 = vector.broadcast %cst_23 : f32 to vector<32x1xf32>
      %24 = arith.mulf %22, %23 : vector<32x1xf32>
      %25 = vector.broadcast %24 : vector<32x1xf32> to vector<32x2xf32>
      %26 = arith.mulf %18, %25 : vector<32x2xf32>
      %cst_24 = arith.constant dense<0.000000e+00> : vector<2xf32>
      %27 = vector.multi_reduction <add>, %26, %cst_24 [0] : vector<32x2xf32> to vector<2xf32>
      %28 = vector.shape_cast %27 : vector<2xf32> to vector<1x2xf32>
      %29 = arith.addf %28, %19 : vector<1x2xf32>
      %cst_25 = arith.constant 0.000000e+00 : f32
      %30 = vector.broadcast %cst_25 : f32 to vector<1x2xf32>
      %31 = arith.maximumf %29, %30 : vector<1x2xf32>
      %32 = vector.broadcast %31 : vector<1x2xf32> to vector<32x2xf32>
      %33 = arith.mulf %20, %32 : vector<32x2xf32>
      %cst_26 = arith.constant dense<0.000000e+00> : vector<32xf32>
      %34 = vector.multi_reduction <add>, %33, %cst_26 [1] : vector<32x2xf32> to vector<32xf32>
      %35 = vector.shape_cast %34 : vector<32xf32> to vector<32x1xf32>
      %36 = arith.addf %35, %21 : vector<32x1xf32>
      %c0_27 = arith.constant 0 : index
      %c0_28 = arith.constant 0 : index
      %37 = vector.load %arg9[%c0_27, %c0_28] : memref<32x1xf32, #tpu.memory_space<vmem>>, vector<32x1xf32>
      %38 = vector.broadcast %37 : vector<32x1xf32> to vector<32x2xf32>
      %39 = arith.mulf %18, %38 : vector<32x2xf32>
      %cst_29 = arith.constant dense<0.000000e+00> : vector<2xf32>
      %40 = vector.multi_reduction <add>, %39, %cst_29 [0] : vector<32x2xf32> to vector<2xf32>
      %41 = vector.shape_cast %40 : vector<2xf32> to vector<1x2xf32>
      %42 = arith.addf %41, %19 : vector<1x2xf32>
      %cst_30 = arith.constant 0.000000e+00 : f32
      %43 = vector.broadcast %cst_30 : f32 to vector<1x2xf32>
      %44 = arith.maximumf %42, %43 : vector<1x2xf32>
      %45 = vector.broadcast %44 : vector<1x2xf32> to vector<32x2xf32>
      %46 = arith.mulf %20, %45 : vector<32x2xf32>
      %cst_31 = arith.constant dense<0.000000e+00> : vector<32xf32>
      %47 = vector.multi_reduction <add>, %46, %cst_31 [1] : vector<32x2xf32> to vector<32xf32>
      %48 = vector.shape_cast %47 : vector<32xf32> to vector<32x1xf32>
      %49 = arith.addf %48, %21 : vector<32x1xf32>
      %50 = arith.addf %36, %49 : vector<32x1xf32>
      %51 = arith.negf %50 : vector<32x1xf32>
      %52 = math.exp %51 : vector<32x1xf32>
      %cst_32 = arith.constant 1.000000e+00 : f32
      %53 = vector.broadcast %cst_32 : f32 to vector<32x1xf32>
      %54 = arith.addf %53, %52 : vector<32x1xf32>
      %55 = arith.divf %53, %54 : vector<32x1xf32>
      %c0_33 = arith.constant 0 : index
      %c0_34 = arith.constant 0 : index
      %c0_35 = arith.constant 0 : index
      %56 = vector.load %arg7[%c0_33, %c0_34, %c0_35] : memref<1x32x1xf32, #tpu.memory_space<vmem>>, vector<1x32x1xf32>
      %57 = vector.shape_cast %56 : vector<1x32x1xf32> to vector<32x1xf32>
      %58 = vector.shape_cast %55 : vector<32x1xf32> to vector<1x32x1xf32>
      tpu.vector_store %arg7[%c0_33, %c0_34, %c0_35], %58 {strides = array<i32>} : memref<1x32x1xf32, #tpu.memory_space<vmem>>, vector<1x32x1xf32>,
    } else {
    }
    return
  }
  func.func @transform_0(%arg0: i32, %arg1: i32) -> (i32, i32, i32) {
    %c0_i32 = arith.constant 0 : i32
    %c0_i32_0 = arith.constant 0 : i32
    return %arg0, %c0_i32, %arg1 : i32, i32, i32
  }
  func.func @transform_1(%arg0: i32, %arg1: i32) -> (i32, i32) {
    %c0_i32 = arith.constant 0 : i32
    %c0_i32_0 = arith.constant 0 : i32
    %c0_i32_1 = arith.constant 0 : i32
    return %c0_i32, %c0_i32_0 : i32, i32
  }
  func.func @transform_2(%arg0: i32, %arg1: i32) -> (i32, i32) {
    %c0_i32 = arith.constant 0 : i32
    %c0_i32_0 = arith.constant 0 : i32
    %c0_i32_1 = arith.constant 0 : i32
    return %c0_i32, %c0_i32_0 : i32, i32
  }
  func.func @transform_3(%arg0: i32, %arg1: i32) -> (i32, i32) {
    %c0_i32 = arith.constant 0 : i32
    %c0_i32_0 = arith.constant 0 : i32
    %c0_i32_1 = arith.constant 0 : i32
    return %c0_i32, %c0_i32_0 : i32, i32
  }
  func.func @transform_4(%arg0: i32, %arg1: i32) -> (i32, i32) {
    %c0_i32 = arith.constant 0 : i32
    %c0_i32_0 = arith.constant 0 : i32
    %c0_i32_1 = arith.constant 0 : i32
    return %c0_i32, %c0_i32_0 : i32, i32
  }
  func.func @transform_5(%arg0: i32, %arg1: i32) -> (i32, i32, i32) {
    %c0_i32 = arith.constant 0 : i32
    %c0_i32_0 = arith.constant 0 : i32
    %c0_i32_1 = arith.constant 0 : i32
    return %arg0, %c0_i32, %c0_i32_0 : i32, i32, i32
  }
}

</mosaic_0001>

<llo_original>
// kernel: tpu_custom_call.1
$region0: #{tpu_custom_call.1}
  #allocation0 [shape = 'u32[]', space=smem, size = 0x4, offset = 0x4, fixed_abs, tag = 'smem constant byte address 0x4 - core index']
  #allocation1 [shape = 'u32[144,128]{1,0:T(1,128)}', space=vmem, size = 0x12000, scoped, tag = 'internal scratch']
  #allocation2 [shape = 'f32[32,1]{1,0:T(8,128)}', space=vmem, size = 0x4000, scoped, tag = 'scratch operand']
  #allocation3 [shape = 'f32[32,1]{1,0:T(8,128)}', space=vmem, size = 0x4000, scoped, tag = 'scratch operand']
  %s0 = inlined_call_operand.hbm [shape: f32[2,32,256], index: 0, kind: input, shape index: {}]
  %s1 = inlined_call_operand.vmem [shape: f32[32,2], index: 1, kind: input, shape index: {}]
  %s2 = inlined_call_operand.vmem [shape: f32[1,2], index: 2, kind: input, shape index: {}]
  %s3 = inlined_call_operand.vmem [shape: f32[32,2], index: 3, kind: input, shape index: {}]
  %s4 = inlined_call_operand.vmem [shape: f32[32,1], index: 4, kind: input, shape index: {}]
  %s5 = inlined_call_operand.vmem [shape: f32[2,32,1], index: 5, kind: output, shape index: {}]
  %s6 = sld [smem:[#allocation0]]
  $region65: #{tpu_custom_call.1} parent=0
    _
  %s8 = ssub.s32 1, %s6
  %s9 = scalar_select 0, %s8, %s6
  $region1: #{tpu_custom_call.1} parent=0
    #allocation4 [shape = 'u8[32768]{0}', space=vmem, size = 0x8000, scoped, tag = 'input window, operand 0']
    #allocation5 [shape = 's32[2]{0}', space=sflag, size = 0x8, scoped, tag = 'scoped memory for tpu_custom_call.1']
    %10 = vsyncpa [#allocation5], 0
    %s11 = scalar_lea.sflag [#allocation5], 1
    %12 = vsyncpa %s11, 0
    loop: start=0, step=1, limit=6
    $region2: #{tpu_custom_call.1} parent=1 // loop_pre_header
      _
    $region3: #{tpu_custom_call.1} parent=1 // loop_header
      %s14 = sphi 0, %s18
      %p15 = scmp.ge.s32.totalorder %s14, 6
      %s21 = sphi 0, %s33
      %s22 = sphi 0, %s29
      %s23 = sphi 0, %s21
      %s24 = sphi 0, %s22
      %s25 = sphi 0, %s23
      %s26 = sphi 0, %s24
      %s38 = sphi 0, %s40
      %s41 = sphi 0, %s38
      %s42 = sphi 0, %s41
      %s58 = sphi 0, %s42
      %s62 = sphi 0, %s62
      %s64 = sphi 0, %s62
      %s65 = sphi 0, %s64
      %s79 = sphi 0, %s65
      %s83 = sphi 0, %s83
      %s85 = sphi 0, %s83
      %s86 = sphi 0, %s85
      %s100 = sphi 0, %s86
      %s104 = sphi 0, %s104
      %s106 = sphi 0, %s104
      %s107 = sphi 0, %s106
      %s121 = sphi 0, %s107
      %s125 = sphi 0, %s125
      %s127 = sphi 0, %s125
      %s128 = sphi 0, %s127
      %s142 = sphi 0, %s128
      %s148 = sphi 0, %s150
      %s151 = sphi 0, %s148
      %s152 = sphi 0, %s151
      %s168 = sphi 0, %s152
    $region4: #{tpu_custom_call.1} parent=1 // loop_header_branch
      %17 = sbr.rel (%p15) target = $region8
    $region5: #{tpu_custom_call.1} parent=1 // loop_body
      %s19 = ssub.s32 %s14, 1
      %s20 = ssub.s32 %s14, 2
      %s27 = sadd.s32 1, %s22
      %p28 = scmp.ge.s32.totalorder %s27, 2
      %s29 = scalar_select %p28, 0, %s27
      %s30 = sadd.s32 1, %s21
      %s31 = scalar_select %p28, %s30, %s21
      %p32 = scmp.ge.s32.totalorder %s31, 2
      %s33 = scalar_select %p32, 0, %s31
      %s34 = ssub.s32 %s21, %s33
      %s35 = ssub.s32 %s22, %s29
      %s36 = sor.u32 %s34, %s35
      %p37 = scmp.eq.s32.totalorder %s36, 0
      %s39 = sadd.s32 %s38, 1
      %s40 = scalar_select %p37, %s38, %s39
      %p43 = pneg %p37
      %p44 = scmp.eq.s32.totalorder %s14, 3
      %p45 = por %p43, %p44
      %p46 = scmp.ne.s32.totalorder %s38, %s41
      %p47 = scmp.eq.s32.totalorder %s14, 0
      %p48 = por %p46, %p47
      %p49 = scmp.ne.s32.totalorder %s38, %s41
      %p50 = scmp.eq.s32.totalorder %s19, 3
      %p51 = por %p49, %p50
      %p52 = scmp.ne.s32.totalorder %s41, %s42
      %p53 = scmp.eq.s32.totalorder %s19, 0
      %p54 = por %p52, %p53
      %p55 = scmp.ne.s32.totalorder %s41, %s42
      %p56 = scmp.eq.s32.totalorder %s20, 3
      %p57 = por %p55, %p56
      %p59 = scmp.ne.s32.totalorder %s42, %s58
      %p60 = scmp.eq.s32.totalorder %s20, 0
      %p61 = por %p59, %p60
      %s63 = sadd.s32 %s62, 1
      %p66 = scmp.eq.s32.totalorder %s14, 3
      %p67 = scmp.ne.s32.totalorder %s62, %s64
      %p68 = scmp.eq.s32.totalorder %s14, 0
      %p69 = por %p67, %p68
      %p70 = scmp.ne.s32.totalorder %s62, %s64
      %p71 = scmp.eq.s32.totalorder %s19, 3
      %p72 = por %p70, %p71
      %p73 = scmp.ne.s32.totalorder %s64, %s65
      %p74 = scmp.eq.s32.totalorder %s19, 0
      %p75 = por %p73, %p74
      %p76 = scmp.ne.s32.totalorder %s64, %s65
      %p77 = scmp.eq.s32.totalorder %s20, 3
      %p78 = por %p76, %p77
      %p80 = scmp.ne.s32.totalorder %s65, %s79
      %p81 = scmp.eq.s32.totalorder %s20, 0
      %p82 = por %p80, %p81
      %s84 = sadd.s32 %s83, 1
      %p87 = scmp.eq.s32.totalorder %s14, 3
      %p88 = scmp.ne.s32.totalorder %s83, %s85
      %p89 = scmp.eq.s32.totalorder %s14, 0
      %p90 = por %p88, %p89
      %p91 = scmp.ne.s32.totalorder %s83, %s85
      %p92 = scmp.eq.s32.totalorder %s19, 3
      %p93 = por %p91, %p92
      %p94 = scmp.ne.s32.totalorder %s85, %s86
      %p95 = scmp.eq.s32.totalorder %s19, 0
      %p96 = por %p94, %p95
      %p97 = scmp.ne.s32.totalorder %s85, %s86
      %p98 = scmp.eq.s32.totalorder %s20, 3
      %p99 = por %p97, %p98
      %p101 = scmp.ne.s32.totalorder %s86, %s100
      %p102 = scmp.eq.s32.totalorder %s20, 0
      %p103 = por %p101, %p102
      %s105 = sadd.s32 %s104, 1
      %p108 = scmp.eq.s32.totalorder %s14, 3
      %p109 = scmp.ne.s32.totalorder %s104, %s106
      %p110 = scmp.eq.s32.totalorder %s14, 0
      %p111 = por %p109, %p110
      %p112 = scmp.ne.s32.totalorder %s104, %s106
      %p113 = scmp.eq.s32.totalorder %s19, 3
      %p114 = por %p112, %p113
      %p115 = scmp.ne.s32.totalorder %s106, %s107
      %p116 = scmp.eq.s32.totalorder %s19, 0
      %p117 = por %p115, %p116
      %p118 = scmp.ne.s32.totalorder %s106, %s107
      %p119 = scmp.eq.s32.totalorder %s20, 3
      %p120 = por %p118, %p119
      %p122 = scmp.ne.s32.totalorder %s107, %s121
      %p123 = scmp.eq.s32.totalorder %s20, 0
      %p124 = por %p122, %p123
      %s126 = sadd.s32 %s125, 1
      %p129 = scmp.eq.s32.totalorder %s14, 3
      %p130 = scmp.ne.s32.totalorder %s125, %s127
      %p131 = scmp.eq.s32.totalorder %s14, 0
      %p132 = por %p130, %p131
      %p133 = scmp.ne.s32.totalorder %s125, %s127
      %p134 = scmp.eq.s32.totalorder %s19, 3
      %p135 = por %p133, %p134
      %p136 = scmp.ne.s32.totalorder %s127, %s128
      %p137 = scmp.eq.s32.totalorder %s19, 0
      %p138 = por %p136, %p137
      %p139 = scmp.ne.s32.totalorder %s127, %s128
      %p140 = scmp.eq.s32.totalorder %s20, 3
      %p141 = por %p139, %p140
      %p143 = scmp.ne.s32.totalorder %s128, %s142
      %p144 = scmp.eq.s32.totalorder %s20, 0
      %p145 = por %p143, %p144
      %s146 = ssub.s32 %s21, %s33
      %p147 = scmp.eq.s32.totalorder %s146, 0
      %s149 = sadd.s32 %s148, 1
      %s150 = scalar_select %p147, %s148, %s149
      %p153 = pneg %p147
      %p154 = scmp.eq.s32.totalorder %s14, 3
      %p155 = por %p153, %p154
      %p156 = scmp.ne.s32.totalorder %s148, %s151
      %p157 = scmp.eq.s32.totalorder %s14, 0
      %p158 = por %p156, %p157
      %p159 = scmp.ne.s32.totalorder %s148, %s151
      %p160 = scmp.eq.s32.totalorder %s19, 3
      %p161 = por %p159, %p160
      %p162 = scmp.ne.s32.totalorder %s151, %s152
      %p163 = scmp.eq.s32.totalorder %s19, 0
      %p164 = por %p162, %p163
      %p165 = scmp.ne.s32.totalorder %s151, %s152
      %p166 = scmp.eq.s32.totalorder %s20, 3
      %p167 = por %p165, %p166
      %p169 = scmp.ne.s32.totalorder %s152, %s168
      %p170 = scmp.eq.s32.totalorder %s20, 0
      %p171 = por %p169, %p170
      %p172 = scmp.le.s32.totalorder 1, %s14
      %p173 = scmp.lt.s32.totalorder %s14, 5
      %p174 = pnand %p172, %p173
      %p175 = pneg %p174
      // Predicated region
      $region9: #{tpu_custom_call.1} parent=5 // pred_check
        _
      $region10: #{tpu_custom_call.1} parent=5 // pred_check_branch
        %177 = sbr.rel (%p174) target = $region12
      $region11: #{tpu_custom_call.1} parent=5 // pred_region
        %s178 = ssub.s32 %s14, 1
        // Predicated region
        $region13: #{tpu_custom_call.1} parent=11 // pred_check
          %p179 = pneg %p75
        $region14: #{tpu_custom_call.1} parent=11 // pred_check_branch
          %181 = sbr.rel (%p179) target = $region16
        $region15: #{tpu_custom_call.1} parent=11 // pred_region
          _
        $region16: #{tpu_custom_call.1} parent=11 // pred_fallthru
          _
        // Predicated region
        $region17: #{tpu_custom_call.1} parent=11 // pred_check
          %p182 = pneg %p96
        $region18: #{tpu_custom_call.1} parent=11 // pred_check_branch
          %184 = sbr.rel (%p182) target = $region20
        $region19: #{tpu_custom_call.1} parent=11 // pred_region
          _
        $region20: #{tpu_custom_call.1} parent=11 // pred_fallthru
          _
        // Predicated region
        $region21: #{tpu_custom_call.1} parent=11 // pred_check
          %p185 = pneg %p117
        $region22: #{tpu_custom_call.1} parent=11 // pred_check_branch
          %187 = sbr.rel (%p185) target = $region24
        $region23: #{tpu_custom_call.1} parent=11 // pred_region
          _
        $region24: #{tpu_custom_call.1} parent=11 // pred_fallthru
          _
        // Predicated region
        $region25: #{tpu_custom_call.1} parent=11 // pred_check
          %p188 = pneg %p138
        $region26: #{tpu_custom_call.1} parent=11 // pred_check_branch
          %190 = sbr.rel (%p188) target = $region28
        $region27: #{tpu_custom_call.1} parent=11 // pred_region
          _
        $region28: #{tpu_custom_call.1} parent=11 // pred_fallthru
          _
      $region12: #{tpu_custom_call.1} parent=5 // pred_fallthru
        _
      %p191 = scmp.lt.s32.totalorder %s14, 4
      // Predicated region
      $region29: #{tpu_custom_call.1} parent=5 // pred_check
        %p192 = pneg %p191
      $region30: #{tpu_custom_call.1} parent=5 // pred_check_branch
        %194 = sbr.rel (%p192) target = $region32
      $region31: #{tpu_custom_call.1} parent=5 // pred_region
        // Predicated region
        $region33: #{tpu_custom_call.1} parent=31 // pred_check
          %p195 = pneg %p48
        $region34: #{tpu_custom_call.1} parent=31 // pred_check_branch
          %197 = sbr.rel (%p195) target = $region36
        $region35: #{tpu_custom_call.1} parent=31 // pred_region
          %s198 = sand.u32 %s38, 1
          %s199 = scalar_lea.sflag [#allocation5], %s198
          %s200 = sand.u32 %s38, 1
          %s201 = smul.addr %s200, 32
          %s202 = scalar_lea.vmem [#allocation4], %s201
          %s204 = ssub.s32 512, 512
          %205 = vsyncadd %s199, %s204
          %s206 = smul.addr %s21, 8
          %s207 = sadd.s32 %s22, %s206
          %s208 = smul.addr %s207, 128
          %s209 = scalar_lea.hbm %s0, %s208
          %s210 = sshll.u32 %s202, 4
          %s211 = int_to_ptr.vmem [resolvable:$true] %s210
          %216 = dma.hbm_to_vmem [thread:$0]  %s209, 512, %s211, %s199, 256, 128, 8
        $region36: #{tpu_custom_call.1} parent=31 // pred_fallthru
          _
      $region32: #{tpu_custom_call.1} parent=5 // pred_fallthru
        _
      %p217 = scmp.le.s32.totalorder 1, %s14
      %p218 = scmp.lt.s32.totalorder %s14, 5
      %p219 = pnand %p217, %p218
      %p220 = pneg %p219
      // Predicated region
      $region37: #{tpu_custom_call.1} parent=5 // pred_check
        _
      $region38: #{tpu_custom_call.1} parent=5 // pred_check_branch
        %222 = sbr.rel (%p219) target = $region40
      $region39: #{tpu_custom_call.1} parent=5 // pred_region
        %s223 = ssub.s32 %s14, 1
        %s224 = sand.u32 %s41, 1
        %s225 = scalar_lea.sflag [#allocation5], %s224
        %s226 = sand.u32 %s41, 1
        %s227 = smul.addr %s226, 32
        %s228 = scalar_lea.vmem [#allocation4], %s227
        // Predicated region
        $region41: #{tpu_custom_call.1} parent=39 // pred_check
          %p229 = pneg %p54
        $region42: #{tpu_custom_call.1} parent=39 // pred_check_branch
          %231 = sbr.rel (%p229) target = $region44
        $region43: #{tpu_custom_call.1} parent=39 // pred_region
          %232 = dma.done %s225, 512
        $region44: #{tpu_custom_call.1} parent=39 // pred_fallthru
          _
        %s233 = sand.u32 %s41, 1
        %s234 = scalar_lea.sflag [#allocation5], %s233
        %s235 = sand.u32 %s41, 1
        %s236 = smul.addr %s235, 32
        %s237 = scalar_lea.vmem [#allocation4], %s236
        %p238 = pneg %p54
        %p239 = pneg %p51
        %p240 = pneg %p75
        %p241 = pneg %p72
        %p242 = pneg %p96
        %p243 = pneg %p93
        %p244 = pneg %p117
        %p245 = pneg %p114
        %p246 = pneg %p138
        %p247 = pneg %p135
        %p248 = pneg %p164
        %p249 = pneg %p161
        %p250 = scmp.lt.s32.totalorder %s23, 1
        %s251 = scalar_select %p250, %s23, 1
        %s252 = smul.addr %s251, 4
        %s253 = smul.addr %s252, 8
        %s254 = scalar_lea.vmem %s5, %s253
        %p255 = scmp.lt.s32.totalorder %s23, 1
        %s256 = scalar_select %p255, %s23, 1
        %s257 = smul.addr %s256, 4
        %s258 = smul.addr %s257, 8
        %s259 = scalar_lea.vmem %s5, %s258
        %p260 = scmp.eq.s32.totalorder %s24, 0
        // Predicated region
        $region45: #{tpu_custom_call.1} parent=39 // pred_check
          %p261 = pneg %p260
        $region46: #{tpu_custom_call.1} parent=39 // pred_check_branch
          %263 = sbr.rel (%p261) target = $region48
        $region47: #{tpu_custom_call.1} parent=39 // pred_region
          %vm264 = vcmask 7168
          %265 = vst.msk [vmem:[#allocation2] sm:$0xff] %vm264, 0.0
          %266 = vst.msk [vmem:[#allocation2 + $0x8] sm:$0xff] %vm264, 0.0
          %267 = vst.msk [vmem:[#allocation2 + $0x10] sm:$0xff] %vm264, 0.0
          %268 = vst.msk [vmem:[#allocation2 + $0x18] sm:$0xff] %vm264, 0.0
          %269 = vst.msk [vmem:[#allocation3] sm:$0xff] %vm264, -inf
          %270 = vst.msk [vmem:[#allocation3 + $0x8] sm:$0xff] %vm264, -inf
          %271 = vst.msk [vmem:[#allocation3 + $0x10] sm:$0xff] %vm264, -inf
          %272 = vst.msk [vmem:[#allocation3 + $0x18] sm:$0xff] %vm264, -inf
        $region48: #{tpu_custom_call.1} parent=39 // pred_fallthru
          _
        %v273 = vld [vmem:[%s228] sm:$0xff]
        %v274 = vld [vmem:[%s228 + $0x8] sm:$0xff]
        %v275 = vld [vmem:[%s228 + $0x10] sm:$0xff]
        %v276 = vld [vmem:[%s228 + $0x18] sm:$0xff]
        %v277 = vld [vmem:[#allocation2] sm:$0xff]
        %v278 = vld [vmem:[#allocation2 + $0x8] sm:$0xff]
        %v279 = vld [vmem:[#allocation2 + $0x10] sm:$0xff]
        %v280 = vld [vmem:[#allocation2 + $0x18] sm:$0xff]
        %281 = vadd.xlane.f32.xlu0 %v273
        %v282 = vpop.xlane.xlu0 %281
        %283 = vadd.xlane.f32.xlu0 %v274
        %v284 = vpop.xlane.xlu0 %283
        %285 = vadd.xlane.f32.xlu0 %v275
        %v286 = vpop.xlane.xlu0 %285
        %287 = vadd.xlane.f32.xlu0 %v276
        %v288 = vpop.xlane.xlu0 %287
        %v289 = vadd.f32 %v277, %v282
        %v290 = vadd.f32 %v278, %v284
        %v291 = vadd.f32 %v279, %v286
        %v292 = vadd.f32 %v280, %v288
        %vm293 = vcmask 7168
        %294 = vst.msk [vmem:[#allocation2] sm:$0xff] %vm293, %v289
        %295 = vst.msk [vmem:[#allocation2 + $0x8] sm:$0xff] %vm293, %v290
        %296 = vst.msk [vmem:[#allocation2 + $0x10] sm:$0xff] %vm293, %v291
        %297 = vst.msk [vmem:[#allocation2 + $0x18] sm:$0xff] %vm293, %v292
        %v298 = vld [vmem:[#allocation3] sm:$0xff]
        %v299 = vld [vmem:[#allocation3 + $0x8] sm:$0xff]
        %v300 = vld [vmem:[#allocation3 + $0x10] sm:$0xff]
        %v301 = vld [vmem:[#allocation3 + $0x18] sm:$0xff]
        %302 = vmax.xlane.f32.xlu0 %v273
        %v303 = vpop.xlane.xlu0 %302
        %304 = vmax.xlane.f32.xlu0 %v274
        %v305 = vpop.xlane.xlu0 %304
        %306 = vmax.xlane.f32.xlu0 %v275
        %v307 = vpop.xlane.xlu0 %306
        %308 = vmax.xlane.f32.xlu0 %v276
        %v309 = vpop.xlane.xlu0 %308
        %v310 = vmax.f32 %v298, %v303
        %v311 = vmax.f32 %v299, %v305
        %v312 = vmax.f32 %v300, %v307
        %v313 = vmax.f32 %v301, %v309
        %314 = vst.msk [vmem:[#allocation3] sm:$0xff] %vm293, %v310
        %315 = vst.msk [vmem:[#allocation3 + $0x8] sm:$0xff] %vm293, %v311
        %316 = vst.msk [vmem:[#allocation3 + $0x10] sm:$0xff] %vm293, %v312
        %317 = vst.msk [vmem:[#allocation3 + $0x18] sm:$0xff] %vm293, %v313
        %p318 = scmp.eq.s32.totalorder %s24, 1
        // Predicated region
        $region49: #{tpu_custom_call.1} parent=39 // pred_check
          %p319 = pneg %p318
        $region50: #{tpu_custom_call.1} parent=39 // pred_check_branch
          %321 = sbr.rel (%p319) target = $region52
        $region51: #{tpu_custom_call.1} parent=39 // pred_region
          %v322 = vld [vmem:[%s1] sm:$0xff]
          %v323 = vld [vmem:[%s1 + $0x8] sm:$0xff]
          %v324 = vld [vmem:[%s1 + $0x10] sm:$0xff]
          %v325 = vld [vmem:[%s1 + $0x18] sm:$0xff]
          %v326 = vld [vmem:[%s2] sm:$0x1]
          %v327 = vld [vmem:[%s3] sm:$0xff]
          %v328 = vld [vmem:[%s3 + $0x8] sm:$0xff]
          %v329 = vld [vmem:[%s3 + $0x10] sm:$0xff]
          %v330 = vld [vmem:[%s3 + $0x18] sm:$0xff]
          %v331 = vld [vmem:[%s4] sm:$0xff]
          %v332 = vld [vmem:[%s4 + $0x8] sm:$0xff]
          %v333 = vld [vmem:[%s4 + $0x10] sm:$0xff]
          %v334 = vld [vmem:[%s4 + $0x18] sm:$0xff]
          %v335 = vld [vmem:[#allocation2] sm:$0xff]
          %v336 = vld [vmem:[#allocation2 + $0x8] sm:$0xff]
          %v337 = vld [vmem:[#allocation2 + $0x10] sm:$0xff]
          %v338 = vld [vmem:[#allocation2 + $0x18] sm:$0xff]
          %v339 = vmul.f32 %v335, 0.00390625
          %v340 = vmul.f32 %v336, 0.00390625
          %v341 = vmul.f32 %v337, 0.00390625
          %v342 = vmul.f32 %v338, 0.00390625
          %344 = vset.pattern.permute.xlu0 0
          %345 = vperm.xlu0 %344, %v339
          %v346 = vpop.permute.xlu0 %345
          %349 = vset.pattern.permute.xlu0 0
          %350 = vperm.xlu0 %349, %v340
          %v351 = vpop.permute.xlu0 %350
          %354 = vset.pattern.permute.xlu0 0
          %355 = vperm.xlu0 %354, %v341
          %v356 = vpop.permute.xlu0 %355
          %359 = vset.pattern.permute.xlu0 0
          %360 = vperm.xlu0 %359, %v342
          %v361 = vpop.permute.xlu0 %360
          %v363 = vmul.f32 %v322, %v346
          %v364 = vmul.f32 %v323, %v351
          %v365 = vmul.f32 %v324, %v356
          %v366 = vmul.f32 %v325, %v361
          %vm367 = vcmask 15360
          %v368 = vsel %vm367, %v363, 0.0
          %v369 = vsel %vm367, %v364, 0.0
          %v370 = vadd.f32 %v368, %v369
          %v371 = vsel %vm367, %v365, 0.0
          %v372 = vadd.f32 %v370, %v371
          %v373 = vsel %vm367, %v366, 0.0
          %v374 = vadd.f32 %v372, %v373
          %v375 = vrot.slane %v374, 4
          %v376 = vadd.f32 %v374, %v375
          %v377 = vrot.slane %v376, 2
          %v378 = vadd.f32 %v376, %v377
          %v379 = vrot.slane %v378, 1
          %v380 = vadd.f32 %v378, %v379
          %v381 = vadd.f32 %v380, %v326
          %v382 = vmax.f32 %v381, 0.0
          %v383 = vlaneseq
          %v384 = vshrl.u32 %v383, 7
          %v385 = vsub.s32 0, %v384
          %v386 = vrot.slane %v382, %v385
          %v387 = vmul.f32 %v327, %v386
          %v388 = vmul.f32 %v328, %v386
          %v389 = vmul.f32 %v329, %v386
          %v390 = vmul.f32 %v330, %v386
          %v391 = vsel %vm367, %v387, 0.0
          %392 = vadd.xlane.f32.xlu0 %v391
          %v393 = vpop.xlane.xlu0 %392
          %v394 = vsel %vm367, %v388, 0.0
          %395 = vadd.xlane.f32.xlu0 %v394
          %v396 = vpop.xlane.xlu0 %395
          %v397 = vsel %vm367, %v389, 0.0
          %398 = vadd.xlane.f32.xlu0 %v397
          %v399 = vpop.xlane.xlu0 %398
          %v400 = vsel %vm367, %v390, 0.0
          %401 = vadd.xlane.f32.xlu0 %v400
          %v402 = vpop.xlane.xlu0 %401
          %v403 = vadd.f32 %v393, %v331
          %v404 = vadd.f32 %v396, %v332
          %v405 = vadd.f32 %v399, %v333
          %v406 = vadd.f32 %v402, %v334
          %v407 = vld [vmem:[#allocation3] sm:$0xff]
          %v408 = vld [vmem:[#allocation3 + $0x8] sm:$0xff]
          %v409 = vld [vmem:[#allocation3 + $0x10] sm:$0xff]
          %v410 = vld [vmem:[#allocation3 + $0x18] sm:$0xff]
          %412 = vset.pattern.permute.xlu0 0
          %413 = vperm.xlu0 %412, %v407
          %v414 = vpop.permute.xlu0 %413
          %417 = vset.pattern.permute.xlu0 0
          %418 = vperm.xlu0 %417, %v408
          %v419 = vpop.permute.xlu0 %418
          %422 = vset.pattern.permute.xlu0 0
          %423 = vperm.xlu0 %422, %v409
          %v424 = vpop.permute.xlu0 %423
          %427 = vset.pattern.permute.xlu0 0
          %428 = vperm.xlu0 %427, %v410
          %v429 = vpop.permute.xlu0 %428
          %v431 = vmul.f32 %v322, %v414
          %v432 = vmul.f32 %v323, %v419
          %v433 = vmul.f32 %v324, %v424
          %v434 = vmul.f32 %v325, %v429
          %v435 = vsel %vm367, %v431, 0.0
          %v436 = vsel %vm367, %v432, 0.0
          %v437 = vadd.f32 %v435, %v436
          %v438 = vsel %vm367, %v433, 0.0
          %v439 = vadd.f32 %v437, %v438
          %v440 = vsel %vm367, %v434, 0.0
          %v441 = vadd.f32 %v439, %v440
          %v442 = vrot.slane %v441, 4
          %v443 = vadd.f32 %v441, %v442
          %v444 = vrot.slane %v443, 2
          %v445 = vadd.f32 %v443, %v444
          %v446 = vrot.slane %v445, 1
          %v447 = vadd.f32 %v445, %v446
          %v448 = vadd.f32 %v447, %v326
          %v449 = vmax.f32 %v448, 0.0
          %v450 = vlaneseq
          %v451 = vshrl.u32 %v450, 7
          %v452 = vsub.s32 0, %v451
          %v453 = vrot.slane %v449, %v452
          %v454 = vmul.f32 %v327, %v453
          %v455 = vmul.f32 %v328, %v453
          %v456 = vmul.f32 %v329, %v453
          %v457 = vmul.f32 %v330, %v453
          %v458 = vsel %vm367, %v454, 0.0
          %459 = vadd.xlane.f32.xlu0 %v458
          %v460 = vpop.xlane.xlu0 %459
          %v461 = vsel %vm367, %v455, 0.0
          %462 = vadd.xlane.f32.xlu0 %v461
          %v463 = vpop.xlane.xlu0 %462
          %v464 = vsel %vm367, %v456, 0.0
          %465 = vadd.xlane.f32.xlu0 %v464
          %v466 = vpop.xlane.xlu0 %465
          %v467 = vsel %vm367, %v457, 0.0
          %468 = vadd.xlane.f32.xlu0 %v467
          %v469 = vpop.xlane.xlu0 %468
          %v470 = vadd.f32 %v460, %v331
          %v471 = vadd.f32 %v463, %v332
          %v472 = vadd.f32 %v466, %v333
          %v473 = vadd.f32 %v469, %v334
          %v474 = vadd.f32 %v403, %v470
          %v475 = vadd.f32 %v404, %v471
          %v476 = vadd.f32 %v405, %v472
          %v477 = vadd.f32 %v406, %v473
          %v478 = vxor.u32 %v474, 2147483648
          %v479 = vxor.u32 %v475, 2147483648
          %v480 = vxor.u32 %v476, 2147483648
          %v481 = vxor.u32 %v477, 2147483648
          %v482 = vmul.f32 %v478, 1.442695
          %v483 = vpow.pop %v482
          %v484 = vmul.f32 %v479, 1.442695
          %v485 = vpow.pop %v484
          %v486 = vmul.f32 %v480, 1.442695
          %v487 = vpow.pop %v486
          %v488 = vmul.f32 %v481, 1.442695
          %v489 = vpow.pop %v488
          %v490 = vadd.f32 %v483, 1.0
          %v491 = vadd.f32 %v485, 1.0
          %v492 = vadd.f32 %v487, 1.0
          %v493 = vadd.f32 %v489, 1.0
          %v494 = vrcp.pop %v490
          %v495 = vmul.f32 1.0, %v494
          %v496 = vrcp.pop %v491
          %v497 = vmul.f32 1.0, %v496
          %v498 = vrcp.pop %v492
          %v499 = vmul.f32 1.0, %v498
          %v500 = vrcp.pop %v493
          %v501 = vmul.f32 1.0, %v500
          %502 = vst.msk [vmem:[%s259] sm:$0xff] %vm293, %v495
          %503 = vst.msk [vmem:[%s259 + $0x8] sm:$0xff] %vm293, %v497
          %504 = vst.msk [vmem:[%s259 + $0x10] sm:$0xff] %vm293, %v499
          %505 = vst.msk [vmem:[%s259 + $0x18] sm:$0xff] %vm293, %v501
        $region52: #{tpu_custom_call.1} parent=39 // pred_fallthru
          _
        %p506 = scmp.lt.s32.totalorder %s23, 1
        %s507 = scalar_select %p506, %s23, 1
        %s508 = smul.addr %s507, 4
        %s509 = smul.addr %s508, 8
        %s510 = scalar_lea.vmem %s5, %s509
        // Predicated region
        $region53: #{tpu_custom_call.1} parent=39 // pred_check
          %p511 = pneg %p161
        $region54: #{tpu_custom_call.1} parent=39 // pred_check_branch
          %513 = sbr.rel (%p511) target = $region56
        $region55: #{tpu_custom_call.1} parent=39 // pred_region
          _
        $region56: #{tpu_custom_call.1} parent=39 // pred_fallthru
          _
      $region40: #{tpu_custom_call.1} parent=5 // pred_fallthru
        _
      %p514 = scmp.le.s32.totalorder 2, %s14
      // Predicated region
      $region57: #{tpu_custom_call.1} parent=5 // pred_check
        %p515 = pneg %p514
      $region58: #{tpu_custom_call.1} parent=5 // pred_check_branch
        %517 = sbr.rel (%p515) target = $region60
      $region59: #{tpu_custom_call.1} parent=5 // pred_region
        %s518 = ssub.s32 %s14, 2
        // Predicated region
        $region61: #{tpu_custom_call.1} parent=59 // pred_check
          %p519 = pneg %p167
        $region62: #{tpu_custom_call.1} parent=59 // pred_check_branch
          %521 = sbr.rel (%p519) target = $region64
        $region63: #{tpu_custom_call.1} parent=59 // pred_region
          %p522 = scmp.lt.s32.totalorder %s25, 1
          %s523 = scalar_select %p522, %s25, 1
          %s524 = smul.addr %s523, 4
          %s525 = smul.addr %s524, 8
          %s526 = scalar_lea.vmem %s5, %s525
        $region64: #{tpu_custom_call.1} parent=59 // pred_fallthru
          _
      $region60: #{tpu_custom_call.1} parent=5 // pred_fallthru
        _
    $region6: #{tpu_custom_call.1} parent=1 // loop_footer
      %s18 = sadd.s32 1, %s14
    $region7: #{tpu_custom_call.1} parent=1 // loop_footer_branch
      %13 = sbr.rel target = $region3
    $region8: #{tpu_custom_call.1} parent=1 // loop_exit
      _
    %527 = vsyncpa [#allocation5], 1
    %s528 = scalar_lea.sflag [#allocation5], 1
    %529 = vsyncpa %s528, 1

</llo_original>
